<compile_context>
chip_gen: v7x
topology: tpu7x:2x2x1
jax: 0.10.0
libtpu: 0.0.40
codegen_flags: <defaults>
</compile_context>

<pallas_src>
import jax
import jax.numpy as jnp
from jax import lax
from jax.experimental import pallas as pl
from jax.experimental.pallas import tpu as pltpu

_LANE = 512            # lane-dense last dim (multiple of 128)
_MAX_TILE_ROWS = 2048  # 2048 x 512 f32 = 4 MiB per input tile
_CHUNK_ROWS = 256      # strip-mine granularity inside a tile (bounds VMEM temps)
_N_PAR = 2             # megacore split on v7x; harmless serial loop on v5e/v6e
_MIN_STEPS = 4         # minimum inner (reduction) grid depth for DMA overlap


def _round_up(a, b):
    return (a + b - 1) // b * b


def _make_kernel(*, tile_rows, lane, chunk_rows, acc_rows, n_tiles, total,
                 needs_mask):
    n_chunks = tile_rows // chunk_rows
    groups = chunk_rows // acc_rows
    full_rows = total // lane          # rows that are entirely valid
    rem_cols = total % lane            # valid columns in row `full_rows`

    def kernel(x_ref, y_ref, o_ref):
        p = pl.program_id(0)
        i = pl.program_id(1)

        # Output block index is constant along the reduction axis i, so this
        # (acc_rows, lane) tile stays resident in VMEM as the accumulator.
        @pl.when(i == 0)
        def _():
            o_ref[...] = jnp.zeros_like(o_ref)

        # Logical (unclamped) row offset of this block in the (R, lane) view.
        row_off = (p * n_tiles + i) * tile_rows

        def chunk_body(c, acc):
            r0 = pl.multiple_of(c * chunk_rows, chunk_rows)
            x = x_ref[pl.ds(r0, chunk_rows), :].astype(jnp.float32)
            y = y_ref[pl.ds(r0, chunk_rows), :].astype(jnp.float32)
            # Numerically-stable BCE with logits (same formulation as PyTorch):
            #   max(x, 0) - x*y + log(1 + exp(-|x|))
            # Exactly 2 EUP transcendentals / element (exp + log1p); the tail
            # mask below stays on the VPU so the EUP path is untouched (v7x).
            elem = jnp.maximum(x, 0.0) - x * y + jnp.log1p(jnp.exp(-jnp.abs(x)))

            if needs_mask:
                # Ragged tail handled in-kernel: rows past the end of the
                # (R, lane) view and columns past `total` in the last partial
                # row contribute exactly 0 (jnp.where, never multiply-by-mask,
                # so OOB garbage / NaN never propagates).
                grow = row_off + r0 + lax.broadcasted_iota(
                    jnp.int32, (chunk_rows, lane), 0)
                valid = grow < full_rows
                if rem_cols:
                    col = lax.broadcasted_iota(jnp.int32, (chunk_rows, lane), 1)
                    valid = valid | ((grow == full_rows) & (col < rem_cols))
                elem = jnp.where(valid, elem, 0.0)

            # Vreg-wise partial sums (pure VPU adds); no per-chunk XLU reduce.
            return acc + jnp.sum(elem.reshape(groups, acc_rows, lane), axis=0)

        acc = lax.fori_loop(0, n_chunks, chunk_body,
                            jnp.zeros((acc_rows, lane), jnp.float32),
                            unroll=True)
        o_ref[...] += acc

    return kernel


def bce_with_logits_loss(y_pred, y):
    """Mean-reduced BCEWithLogitsLoss over all elements (any input shape)."""
    assert y_pred.shape == y.shape
    total = y_pred.size
    assert total > 0
    lane = _LANE

    # Flatten (cheap) to build a lane-dense 2-D view.
    x_flat = y_pred.reshape(-1)
    y_flat = y.reshape(-1)
    rem = total % lane
    if rem:
        # Pad only the < 512-element residual required for the (R, lane) view
        # to exist; padded values are never used (masked in-kernel).
        # TODO(synk): a fully pad-free ragged tail would need 1-D or
        # original-shape tiling; this extra pass only triggers when
        # total % 512 != 0.
        pad = lane - rem
        x_flat = jnp.pad(x_flat, (0, pad))
        y_flat = jnp.pad(y_flat, (0, pad))
    R = pl.cdiv(total, lane)
    x2 = x_flat.reshape(R, lane)
    y2 = y_flat.reshape(R, lane)

    # Sub-32-bit dtypes: round row tiling to the packed native sublane count.
    sub = {4: 8, 2: 16, 1: 32}.get(jnp.dtype(y_pred.dtype).itemsize, 8)

    # Tile size: as large as possible (HBM-bound kernel) but small enough that
    # each megacore partition still gets >= _MIN_STEPS inner reduction steps.
    tile_rows = min(_MAX_TILE_ROWS,
                    _round_up(max(pl.cdiv(R, _N_PAR * _MIN_STEPS), 1), sub))
    if tile_rows > _CHUNK_ROWS:
        tile_rows = _round_up(tile_rows, _CHUNK_ROWS)

    if tile_rows >= R:
        # Whole problem is a single full-extent block (always a legal spec).
        tile_rows, n_par, n_tiles = R, 1, 1
    else:
        n_par, n_tiles = _N_PAR, pl.cdiv(R, _N_PAR * tile_rows)

    chunk_rows = min(tile_rows, _CHUNK_ROWS)
    acc_rows = 8 if tile_rows % 8 == 0 else tile_rows
    n_blocks = pl.cdiv(R, tile_rows)
    # Skip all mask code when the grid covers the data exactly.
    needs_mask = (rem != 0) or (n_par * n_tiles * tile_rows != R)

    # Clamp trailing fully-out-of-range blocks onto the last real block; the
    # in-kernel mask (driven by the logical offset) zeroes their contribution.
    def in_map(p, i):
        return (jnp.minimum(p * n_tiles + i, n_blocks - 1), 0)

    kernel = _make_kernel(tile_rows=tile_rows, lane=lane, chunk_rows=chunk_rows,
                          acc_rows=acc_rows, n_tiles=n_tiles, total=total,
                          needs_mask=needs_mask)

    partials = pl.pallas_call(
        kernel,
        out_shape=jax.ShapeDtypeStruct((n_par * acc_rows, lane), jnp.float32),
        grid=(n_par, n_tiles),
        in_specs=[
            pl.BlockSpec((tile_rows, lane), in_map),
            pl.BlockSpec((tile_rows, lane), in_map),
        ],
        out_specs=pl.BlockSpec((acc_rows, lane), lambda p, i: (p, 0)),
        compiler_params=pltpu.CompilerParams(
            dimension_semantics=("parallel", "arbitrary"),
            vmem_limit_bytes=32 * 1024 * 1024,  # v7x-safe; do not raise blindly
        ),
    )(x2, y2)

    # Single tiny cross-lane reduction + mean, done once outside the kernel.
    return jnp.sum(partials) * (1.0 / float(total))


def _reference(y_pred, y):
    x = y_pred.astype(jnp.float32)
    t = y.astype(jnp.float32)
    elem = jnp.maximum(x, 0.0) - x * t + jnp.log1p(jnp.exp(-jnp.abs(x)))
    return jnp.mean(elem)


if __name__ == "__main__":
    key = jax.random.PRNGKey(0)

    cases = [
        ((16, 28), jnp.float32),    # ragged tail (448 elems): in-kernel mask path
        ((64, 32), jnp.float32),    # exact multiple of 512: dense, mask-free path
        ((300, 77), jnp.float32),   # multi-block grid with partial last block
        ((48, 28), jnp.bfloat16),   # sub-32-bit dtype path
    ]
    for shape, dtype in cases:
        key, k1, k2 = jax.random.split(key, 3)
        y_pred = (jax.random.normal(k1, shape, dtype=jnp.float32) * 2.0).astype(dtype)
        y = (jax.random.uniform(k2, shape) > 0.5).astype(dtype)
        loss = jax.block_until_ready(bce_with_logits_loss(y_pred, y))
        ref = jax.block_until_ready(_reference(y_pred, y))
        assert jnp.allclose(loss, ref, rtol=1e-5, atol=1e-5), (shape, dtype, loss, ref)

    print("KERNEL_OK")
</pallas_src>

<mosaic_0001>
module attributes {stable_mosaic.version = 11 : i64} {
  func.func @kernel(%arg0: i32, %arg1: i32, %arg2: memref<1x512xf32, #tpu.memory_space<vmem>>, %arg3: memref<1x512xf32, #tpu.memory_space<vmem>>, %arg4: memref<1x512xf32, #tpu.memory_space<vmem>>) attributes {dimension_semantics = [#tpu.dimension_semantics<parallel>, #tpu.dimension_semantics<arbitrary>], iteration_bounds = array<i64: 1, 1>, scalar_prefetch = 0 : i64, scratch_operands = 0 : i64, tpu.core_type = #tpu.core_type<tc>, window_params = [{transform_indices = @transform_0, window_bounds = array<i64: 1, 512>}, {transform_indices = @transform_1, window_bounds = array<i64: 1, 512>}, {transform_indices = @transform_2, window_bounds = array<i64: 1, 512>}]} {
    %c0_i32 = arith.constant 0 : i32
    %0 = arith.cmpi eq, %arg1, %c0_i32 : i32
    %1 = arith.extui %0 : i1 to i32
    %c0_i32_0 = arith.constant 0 : i32
    %2 = arith.cmpi ne, %1, %c0_i32_0 : i32
    scf.if %2 {
      %cst_16 = arith.constant 0.000000e+00 : f32
      %44 = vector.broadcast %cst_16 : f32 to vector<1x512xf32>
      %c0_17 = arith.constant 0 : index
      %c0_18 = arith.constant 0 : index
      %45 = vector.load %arg4[%c0_17, %c0_18] : memref<1x512xf32, #tpu.memory_space<vmem>>, vector<1x512xf32>
      tpu.vector_store %arg4[%c0_17, %c0_18], %44 {strides = array<i32>} : memref<1x512xf32, #tpu.memory_space<vmem>>, vector<1x512xf32>,
    } else {
    }
    %c1_i32 = arith.constant 1 : i32
    %3 = arith.muli %arg0, %c1_i32 : i32
    %4 = arith.addi %3, %arg1 : i32
    %c1_i32_1 = arith.constant 1 : i32
    %5 = arith.muli %4, %c1_i32_1 : i32
    %cst = arith.constant 0.000000e+00 : f32
    %6 = vector.broadcast %cst : f32 to vector<1x512xf32>
    %c0_i32_2 = arith.constant 0 : i32
    %c1_i32_3 = arith.constant 1 : i32
    %7 = arith.muli %c0_i32_2, %c1_i32_3 : i32
    %8 = tpu.assume_multiple %7, 1 : i32
    %9 = arith.index_cast %8 : i32 to index
    %c0 = arith.constant 0 : index
    %10 = vector.load %arg2[%9, %c0] : memref<1x512xf32, #tpu.memory_space<vmem>>, vector<1x512xf32>
    %11 = arith.index_cast %8 : i32 to index
    %c0_4 = arith.constant 0 : index
    %12 = vector.load %arg3[%11, %c0_4] : memref<1x512xf32, #tpu.memory_space<vmem>>, vector<1x512xf32>
    %cst_5 = arith.constant 0.000000e+00 : f32
    %13 = vector.broadcast %cst_5 : f32 to vector<1x512xf32>
    %14 = arith.maximumf %10, %13 : vector<1x512xf32>
    %15 = arith.mulf %10, %12 : vector<1x512xf32>
    %16 = arith.subf %14, %15 : vector<1x512xf32>
    %17 = math.absf %10 : vector<1x512xf32>
    %cst_6 = arith.constant 0.000000e+00 : f32
    %18 = vector.broadcast %cst_6 : f32 to vector<1x512xf32>
    %19 = arith.subf %18, %17 : vector<1x512xf32>
    %20 = math.exp %19 : vector<1x512xf32>
    %21 = math.log1p %20 : vector<1x512xf32>
    %22 = arith.addf %16, %21 : vector<1x512xf32>
    %23 = arith.addi %5, %8 : i32
    %24 = tpu.iota {dimensions = array<i32: 0>} : vector<1x512xi32>
    %25 = vector.broadcast %23 : i32 to vector<1x512xi32>
    %26 = arith.addi %25, %24 : vector<1x512xi32>
    %c0_i32_7 = arith.constant 0 : i32
    %27 = vector.broadcast %c0_i32_7 : i32 to vector<1x512xi32>
    %28 = arith.cmpi slt, %26, %27 : vector<1x512xi32>
    %29 = tpu.iota {dimensions = array<i32: 1>} : vector<1x512xi32>
    %c0_i32_8 = arith.constant 0 : i32
    %30 = vector.broadcast %c0_i32_8 : i32 to vector<1x512xi32>
    %31 = arith.cmpi eq, %26, %30 : vector<1x512xi32>
    %c448_i32 = arith.constant 448 : i32
    %32 = vector.broadcast %c448_i32 : i32 to vector<1x512xi32>
    %33 = arith.cmpi slt, %29, %32 : vector<1x512xi32>
    %34 = arith.andi %31, %33 : vector<1x512xi1>
    %35 = arith.ori %28, %34 : vector<1x512xi1>
    %cst_9 = arith.constant 0.000000e+00 : f32
    %36 = vector.broadcast %cst_9 : f32 to vector<1x512xf32>
    %37 = arith.select %35, %22, %36 : vector<1x512xi1>, vector<1x512xf32>
    %38 = vector.shape_cast %37 : vector<1x512xf32> to vector<1x1x512xf32>
    %cst_10 = arith.constant dense<0.000000e+00> : vector<1x512xf32>
    %39 = vector.multi_reduction <add>, %38, %cst_10 [0] : vector<1x1x512xf32> to vector<1x512xf32>
    %40 = arith.addf %6, %39 : vector<1x512xf32>
    %c1_i32_11 = arith.constant 1 : i32
    %c0_12 = arith.constant 0 : index
    %c0_13 = arith.constant 0 : index
    %41 = vector.load %arg4[%c0_12, %c0_13] : memref<1x512xf32, #tpu.memory_space<vmem>>, vector<1x512xf32>
    %42 = arith.addf %41, %40 : vector<1x512xf32>
    %c0_14 = arith.constant 0 : index
    %c0_15 = arith.constant 0 : index
    %43 = vector.load %arg4[%c0_14, %c0_15] : memref<1x512xf32, #tpu.memory_space<vmem>>, vector<1x512xf32>
    tpu.vector_store %arg4[%c0_14, %c0_15], %42 {strides = array<i32>} : memref<1x512xf32, #tpu.memory_space<vmem>>, vector<1x512xf32>,
    return
  }
  func.func @transform_0(%arg0: i32, %arg1: i32) -> (i32, i32) {
    %c1_i32 = arith.constant 1 : i32
    %0 = arith.muli %arg0, %c1_i32 : i32
    %1 = arith.addi %0, %arg1 : i32
    %c0_i32 = arith.constant 0 : i32
    %2 = arith.minsi %1, %c0_i32 : i32
    %c0_i32_0 = arith.constant 0 : i32
    %c0_i32_1 = arith.constant 0 : i32
    return %2, %c0_i32_0 : i32, i32
  }
  func.func @transform_1(%arg0: i32, %arg1: i32) -> (i32, i32) {
    %c1_i32 = arith.constant 1 : i32
    %0 = arith.muli %arg0, %c1_i32 : i32
    %1 = arith.addi %0, %arg1 : i32
    %c0_i32 = arith.constant 0 : i32
    %2 = arith.minsi %1, %c0_i32 : i32
    %c0_i32_0 = arith.constant 0 : i32
    %c0_i32_1 = arith.constant 0 : i32
    return %2, %c0_i32_0 : i32, i32
  }
  func.func @transform_2(%arg0: i32, %arg1: i32) -> (i32, i32) {
    %c0_i32 = arith.constant 0 : i32
    %c0_i32_0 = arith.constant 0 : i32
    return %arg0, %c0_i32 : i32, i32
  }
}

</mosaic_0001>

<llo_original>
// kernel: tpu_custom_call.1
$region0: #{tpu_custom_call.1}
  #allocation0 [shape = 'u32[]', space=smem, size = 0x4, offset = 0x4, fixed_abs, tag = 'smem constant byte address 0x4 - core index']
  #allocation1 [shape = 'u32[144,128]{1,0:T(1,128)}', space=vmem, size = 0x12000, scoped, tag = 'internal scratch']
  %s0 = inlined_call_operand.hbm [shape: f32[1,512], index: 0, kind: input, shape index: {}]
  %s1 = inlined_call_operand.hbm [shape: f32[1,512], index: 1, kind: input, shape index: {}]
  %s2 = inlined_call_operand.hbm [shape: f32[1,512], index: 2, kind: output, shape index: {}]
  %s3 = sld [smem:[#allocation0]]
  $region30: #{tpu_custom_call.1} parent=0
    _
  %s5 = ssub.s32 1, %s3
  %s6 = scalar_select 0, %s5, %s3
  $region1: #{tpu_custom_call.1} parent=0
    #allocation2 [shape = 'u8[2048]{0}', space=vmem, size = 0x800, scoped, tag = 'input window, operand 0, single buffered']
    #allocation3 [shape = 's32[1]{0}', space=sflag, size = 0x4, scoped, tag = 'scoped memory for tpu_custom_call.1']
    #allocation4 [shape = 's32[1]{0}', space=sflag, size = 0x4, scoped, tag = 'scoped memory for tpu_custom_call.1']
    #allocation5 [shape = 'u8[2048]{0}', space=vmem, size = 0x800, scoped, tag = 'input window, operand 1, single buffered']
    #allocation6 [shape = 's32[1]{0}', space=sflag, size = 0x4, scoped, tag = 'scoped memory for tpu_custom_call.1']
    #allocation7 [shape = 'u8[2048]{0}', space=vmem, size = 0x800, scoped, tag = 'output window, operand 0, single buffered']
    %7 = vsyncpa [#allocation3], 0
    %8 = vsyncpa [#allocation6], 0
    %9 = vsyncpa [#allocation4], 0
    // Predicated region
    $region2: #{tpu_custom_call.1} parent=1 // pred_check
      _
    $region3: #{tpu_custom_call.1} parent=1 // pred_check_branch
      %11 = sbr.rel (0) target = $region5
    $region4: #{tpu_custom_call.1} parent=1 // pred_region
      %s12 = sadd.s32 0, 0
      %p13 = scmp.lt.s32.totalorder %s12, 0
      %s14 = scalar_select %p13, %s12, 0
      %s16 = ssub.s32 64, 64
      %17 = vsyncadd [#allocation3], %s16
      %s18 = smul.addr %s14, 4
      %s19 = smul.addr %s18, 16
      %s20 = scalar_lea.hbm %s0, %s19
      %s22 = sshll.u32 [#allocation2], 4
      %s23 = int_to_ptr.vmem [resolvable:$true] %s22
      %25 = dma.hbm_to_vmem [thread:$0]  %s20, 64, %s23, [#allocation3]
    $region5: #{tpu_custom_call.1} parent=1 // pred_fallthru
      _
    // Predicated region
    $region6: #{tpu_custom_call.1} parent=1 // pred_check
      _
    $region7: #{tpu_custom_call.1} parent=1 // pred_check_branch
      %27 = sbr.rel (0) target = $region9
    $region8: #{tpu_custom_call.1} parent=1 // pred_region
      %s28 = sadd.s32 0, 0
      %p29 = scmp.lt.s32.totalorder %s28, 0
      %s30 = scalar_select %p29, %s28, 0
      %s32 = ssub.s32 64, 64
      %33 = vsyncadd [#allocation6], %s32
      %s34 = smul.addr %s30, 4
      %s35 = smul.addr %s34, 16
      %s36 = scalar_lea.hbm %s1, %s35
      %s38 = sshll.u32 [#allocation5], 4
      %s39 = int_to_ptr.vmem [resolvable:$true] %s38
      %41 = dma.hbm_to_vmem [thread:$0]  %s36, 64, %s39, [#allocation6]
    $region9: #{tpu_custom_call.1} parent=1 // pred_fallthru
      _
    // Predicated region
    $region10: #{tpu_custom_call.1} parent=1 // pred_check
      _
    $region11: #{tpu_custom_call.1} parent=1 // pred_check_branch
      %43 = sbr.rel (0) target = $region13
    $region12: #{tpu_custom_call.1} parent=1 // pred_region
      %44 = dma.done [#allocation3], 64
    $region13: #{tpu_custom_call.1} parent=1 // pred_fallthru
      _
    // Predicated region
    $region14: #{tpu_custom_call.1} parent=1 // pred_check
      _
    $region15: #{tpu_custom_call.1} parent=1 // pred_check_branch
      %46 = sbr.rel (0) target = $region17
    $region16: #{tpu_custom_call.1} parent=1 // pred_region
      %47 = dma.done [#allocation6], 64
    $region17: #{tpu_custom_call.1} parent=1 // pred_fallthru
      _
    %s48 = sadd.s32 0, 0
    %p49 = scmp.lt.s32.totalorder %s48, 0
    %s50 = scalar_select %p49, %s48, 0
    %s51 = sadd.s32 0, 0
    %p52 = scmp.lt.s32.totalorder %s51, 0
    %s53 = scalar_select %p52, %s51, 0
    %p54 = scmp.eq.s32.totalorder 0, 0
    // Predicated region
    $region18: #{tpu_custom_call.1} parent=1 // pred_check
      %p55 = pneg %p54
    $region19: #{tpu_custom_call.1} parent=1 // pred_check_branch
      %57 = sbr.rel (%p55) target = $region21
    $region20: #{tpu_custom_call.1} parent=1 // pred_region
      %v58 = vlaneseq
      %vm59 = vcmp.ge.s32.totalorder %v58, 0
      %vm60 = vcmp.lt.s32.totalorder %v58, 512
      %vm61 = vmand %vm59, %vm60
      %62 = vst.msk [vmem:[#allocation7] sm:$0xf] %vm61, 0.0
    $region21: #{tpu_custom_call.1} parent=1 // pred_fallthru
      _
    %s63 = sadd.s32 0, 0
    %s64 = smul.u32 0, 4
    %s65 = scalar_lea.vmem [#allocation2], %s64
    %v66 = vld [vmem:[%s65] sm:$0xf]
    %s67 = scalar_lea.vmem [#allocation5], %s64
    %v68 = vld [vmem:[%s67] sm:$0xf]
    %v69 = vmax.f32 %v66, 0.0
    %v70 = vmul.f32 %v66, %v68
    %v71 = vsub.f32 %v69, %v70
    %v72 = vand.u32 2147483647, %v66
    %v73 = vsub.f32 0.0, %v72
    %v74 = vmul.f32 %v73, 1.442695
    %v75 = vpow.pop %v74
    %v76 = vadd.f32 %v75, 1.0
    %v77 = vlog2.pop %v76
    %v78 = vmul.f32 %v77, 0.6931472
    %v79 = vmul.f32 -0.5, %v75
    %v80 = vadd.f32 %v79, 1.0
    %v81 = vmul.f32 %v80, %v75
    %v82 = vand.u32 2147483647, %v75
    %vm83 = vcmp.lt.f32.partialorder %v82, 0.0004427343
    %v84 = vsel %vm83, %v81, %v78
    %v85 = vadd.f32 %v71, %v84
    %s86 = sadd.s32 %s63, 0
    %v87 = vlaneseq
    %v88 = vshrl.u32 %v87, 7
    %v89 = vstv %s86
    %v90 = vadd.s32 %v89, %v88
    %vm91 = vcmp.lt.s32.totalorder %v90, 0
    %v92 = vlaneseq
    %v93 = vand.u32 %v92, 127
    %v94 = vadd.s32 %v93, 128
    %v95 = vadd.s32 %v93, 256
    %v96 = vadd.s32 %v93, 384
    %vm97 = vcmp.eq.s32.totalorder %v90, 0
    %vm98 = vcmp.lt.s32.totalorder %v93, 448
    %vm99 = vcmp.lt.s32.totalorder %v94, 448
    %vm100 = vcmp.lt.s32.totalorder %v95, 448
    %vm101 = vcmp.lt.s32.totalorder %v96, 448
    %vm102 = vmand %vm97, %vm98
    %vm103 = vmand %vm97, %vm99
    %vm104 = vmand %vm97, %vm100
    %vm105 = vmand %vm97, %vm101
    %vm106 = vmor %vm91, %vm102
    %vm107 = vmor %vm91, %vm103
    %vm108 = vmor %vm91, %vm104
    %vm109 = vmor %vm91, %vm105
    %v111 = vlaneseq
    %v112 = vshrl.u32 %v111, 7
    %v113 = vsub.s32 0, %v112
    %v114 = vrot.slane %v85, %v113
    %v115 = vlaneseq
    %v116 = vshrl.u32 %v115, 7
    %v117 = vsub.s32 1, %v116
    %v118 = vrot.slane %v85, %v117
    %v119 = vlaneseq
    %v120 = vshrl.u32 %v119, 7
    %v121 = vsub.s32 2, %v120
    %v122 = vrot.slane %v85, %v121
    %v123 = vlaneseq
    %v124 = vshrl.u32 %v123, 7
    %v125 = vsub.s32 3, %v124
    %v126 = vrot.slane %v85, %v125
    %v131 = vsel %vm106, %v114, 0.0
    %v132 = vsel %vm107, %v118, 0.0
    %v133 = vsel %vm108, %v122, 0.0
    %v134 = vsel %vm109, %v126, 0.0
    %v135 = vadd.f32 %v131, 0.0
    %v136 = vadd.f32 %v132, 0.0
    %v137 = vadd.f32 %v133, 0.0
    %v138 = vadd.f32 %v134, 0.0
    %v139 = vadd.f32 %v135, 0.0
    %v140 = vadd.f32 %v136, 0.0
    %v141 = vadd.f32 %v137, 0.0
    %v142 = vadd.f32 %v138, 0.0
    %v143 = vld [vmem:[#allocation7] sm:$0xf]
    %v148 = vcombine.low %v139, %v140
    %v149 = vcombine.low %v141, %v142
    %v151 = vunpack.c.l.s4 1966171168
    %v152 = vunpack.c.0.s8 %v151
    %v153 = vlaneseq
    %v154 = vshrl.u32 %v153, 7
    %v155 = vsub.s32 %v152, %v154
    %v156 = vrot.slane %v148, %v155
    %v158 = vunpack.c.l.s4 1966171168
    %v159 = vunpack.c.0.s8 %v158
    %v160 = vlaneseq
    %v161 = vshrl.u32 %v160, 7
    %v162 = vsub.s32 %v159, %v161
    %v163 = vrot.slane %v149, %v162
    %v164 = vcombine.low %v156, %v163
    %v166 = vunpack.c.l.s4 1966171168
    %v167 = vunpack.c.0.s8 %v166
    %v168 = vlaneseq
    %v169 = vshrl.u32 %v168, 7
    %v170 = vsub.s32 %v167, %v169
    %v171 = vrot.slane %v164, %v170
    %v173 = vadd.f32 %v143, %v171
    %v174 = vlaneseq
    %vm175 = vcmp.ge.s32.totalorder %v174, 0
    %vm176 = vcmp.lt.s32.totalorder %v174, 512
    %vm177 = vmand %vm175, %vm176
    %178 = vst.msk [vmem:[#allocation7] sm:$0xf] %vm177, %v173
    // Predicated region
    $region22: #{tpu_custom_call.1} parent=1 // pred_check
      _
    $region23: #{tpu_custom_call.1} parent=1 // pred_check_branch
      %180 = sbr.rel (0) target = $region25
    $region24: #{tpu_custom_call.1} parent=1 // pred_region
      %s182 = ssub.s32 64, 64
      %183 = vsyncadd [#allocation4], %s182
      %s185 = sshll.u32 [#allocation7], 4
      %s186 = int_to_ptr.vmem [resolvable:$true] %s185
      %188 = dma.vmem_to_hbm [thread:$0]  %s186, 64, %s2, [#allocation4]
    $region25: #{tpu_custom_call.1} parent=1 // pred_fallthru
      _
    // Predicated region
    $region26: #{tpu_custom_call.1} parent=1 // pred_check
      _
    $region27: #{tpu_custom_call.1} parent=1 // pred_check_branch
      %190 = sbr.rel (0) target = $region29
    $region28: #{tpu_custom_call.1} parent=1 // pred_region
      %191 = dma.done [#allocation4], 64
    $region29: #{tpu_custom_call.1} parent=1 // pred_fallthru
      _
    %192 = vsyncpa [#allocation3], 1
    %193 = vsyncpa [#allocation6], 1
    %194 = vsyncpa [#allocation4], 1

</llo_original>
